<compile_context>
chip_gen: v7x
topology: tpu7x:2x2x1
jax: 0.10.0
libtpu: 0.0.40
codegen_flags: <defaults>
</compile_context>

<pallas_src>
import functools

import jax
import jax.numpy as jnp
from jax.experimental import pallas as pl
from jax.experimental.pallas import tpu as pltpu

H1, H2 = 256, 128
LN_EPS = 1e-5


def _round_up(v, m):
    return ((v + m - 1) // m) * m


def _layernorm(x, gamma, beta, n_true):
    """One-pass LayerNorm (biased variance, eps=1e-5) over the last dim.

    `n_true` is the number of *valid* features.  Any columns of `x` beyond
    n_true must be exactly zero so they do not perturb the sums (used for
    the lane-padded LN3).  The two reductions are independent, so they
    overlap on the XLU instead of serializing like the two-pass form.
    """
    inv_n = 1.0 / n_true
    s1 = jnp.sum(x, axis=-1, keepdims=True)
    s2 = jnp.sum(x * x, axis=-1, keepdims=True)
    mu = s1 * inv_n
    var = jnp.maximum(s2 * inv_n - mu * mu, 0.0)
    scale = gamma * jax.lax.rsqrt(var + LN_EPS)   # rsqrt -> EUP (free slot)
    return (x - mu) * scale + beta


def c22_encoder_kernel(
    x_ref,          # (tm, D)    f32 (or bf16 producer)
    p0_ref,         # (2, D)     f32   [gamma0; beta0]
    w1_ref,         # (D, H1)    bf16
    p1_ref,         # (3, H1)    f32   [bias1; gamma1; beta1]
    w2_ref,         # (H1, H2)   bf16
    p2_ref,         # (3, H2)    f32
    w3_ref,         # (H2, EP)   bf16  (zero-padded cols E..EP)
    p3_ref,         # (3, EP)    f32   (zero-padded cols E..EP)
    o_ref,          # (tm, EP)
    *,
    e_true,
):
    x = x_ref[...]
    if x.dtype != jnp.float32:   # accept bf16 producers; LN math stays f32
        x = x.astype(jnp.float32)

    # ln0
    p0 = p0_ref[...]
    xn = _layernorm(x, p0[0:1], p0[1:2], x.shape[-1])

    # fc1 -> ln1 -> relu   (dropout = identity in eval)
    p1 = p1_ref[...]
    h1 = jnp.dot(xn.astype(jnp.bfloat16), w1_ref[...],
                 preferred_element_type=jnp.float32) + p1[0:1]
    h1 = jnp.maximum(_layernorm(h1, p1[1:2], p1[2:3], H1), 0.0)

    # fc2 -> ln2 -> relu
    p2 = p2_ref[...]
    h2 = jnp.dot(h1.astype(jnp.bfloat16), w2_ref[...],
                 preferred_element_type=jnp.float32) + p2[0:1]
    h2 = jnp.maximum(_layernorm(h2, p2[1:2], p2[2:3], H2), 0.0)

    # fc3 -> ln3 -> relu  (lane-dense: EP >= 128 columns; true width e_true).
    # Padded weight/bias columns are zero -> padded h3 columns are exactly 0;
    # LN3 stats use e_true; padded gamma/beta are zero -> padded outputs stay 0.
    p3 = p3_ref[...]
    h3 = jnp.dot(h2.astype(jnp.bfloat16), w3_ref[...],
                 preferred_element_type=jnp.float32) + p3[0:1]
    h3 = jnp.maximum(_layernorm(h3, p3[1:2], p3[2:3], e_true), 0.0)

    o_ref[...] = h3.astype(o_ref.dtype)


@functools.partial(jax.jit, static_argnames=("tm",))
def c22_encoder(x, params, tm=1024):
    """x: (B, S, D).  Returns (B, S, E), eval-mode (dropout=identity) semantics."""
    B, S, D = x.shape
    E = params["w3"].shape[1]
    EP = _round_up(max(E, 128), 128)   # lane-dense output width
    N = B * S

    # --- static row-tile selection ---------------------------------------
    # * at least 2 grid tiles so the "parallel" row axis can shard across
    #   v7x's two TensorCores even for modest B*S
    # * cap so the double-buffered x tile stays well inside the VMEM limit
    tm_eff = min(tm, max(8, _round_up(pl.cdiv(N, 2), 8)))
    vmem_row_cap = max(256, ((8 * 1024 * 1024) // (D * 4)) // 8 * 8)
    tm_eff = max(8, min(tm_eff, vmem_row_cap))
    n_tiles = pl.cdiv(N, tm_eff)       # ragged last block handled by Pallas

    x_flat = x.reshape(N, D)           # contiguous reshape -> free

    # Weights in bf16 for the MXU; LN/bias params stay f32 and are folded
    # into a few concatenated blocks (fewer descriptors / buffers).
    w1 = params["w1"].astype(jnp.bfloat16)
    w2 = params["w2"].astype(jnp.bfloat16)
    w3 = jnp.pad(params["w3"], ((0, 0), (0, EP - E))).astype(jnp.bfloat16)
    p0 = jnp.concatenate([params["g0"], params["b0"]], axis=0)            # (2, D)
    p1 = jnp.concatenate([params["b1"], params["g1"], params["bt1"]], 0)  # (3, H1)
    p2 = jnp.concatenate([params["b2"], params["g2"], params["bt2"]], 0)  # (3, H2)
    p3 = jnp.pad(
        jnp.concatenate([params["b3"], params["g3"], params["bt3"]], 0),
        ((0, 0), (0, EP - E)))                                            # (3, EP)

    def const_spec(shape):
        # Constant index_map: block stays resident in VMEM across the grid.
        # TODO(synk): for very large D on v7x, pipeline_mode=pl.Buffered(1) on
        # these resident blocks would drop their redundant second buffer.
        return pl.BlockSpec(shape, lambda i: (0, 0))

    kernel = functools.partial(c22_encoder_kernel, e_true=E)

    out = pl.pallas_call(
        kernel,
        out_shape=jax.ShapeDtypeStruct((N, EP), x.dtype),
        grid_spec=pl.GridSpec(
            grid=(n_tiles,),
            in_specs=[
                pl.BlockSpec((tm_eff, D), lambda i: (i, 0)),
                const_spec((2, D)),
                const_spec((D, H1)), const_spec((3, H1)),
                const_spec((H1, H2)), const_spec((3, H2)),
                const_spec((H2, EP)), const_spec((3, EP)),
            ],
            out_specs=pl.BlockSpec((tm_eff, EP), lambda i: (i, 0)),
        ),
        compiler_params=pltpu.CompilerParams(
            dimension_semantics=("parallel",),
            vmem_limit_bytes=32 * 1024 * 1024,
        ),
    )(x_flat, p0, w1, p1, w2, p2, w3, p3)

    return out[:, :E].reshape(B, S, E)


def init_params(key, input_dim, embedding_dim=64):
    """Deterministic synthetic parameters matching the PyTorch module's shapes.

    Linear weights are stored pre-transposed as (in, out) so the kernel does
    x @ W (equivalent to PyTorch's x @ W.T with W of shape (out, in)).
    LayerNorm gamma=1, beta=0 (PyTorch defaults)."""
    ks = jax.random.split(key, 6)

    def lin(kw, kb, fan_in, fan_out):
        bound = 1.0 / jnp.sqrt(fan_in)
        w = jax.random.uniform(kw, (fan_in, fan_out), jnp.float32, -bound, bound)
        b = jax.random.uniform(kb, (1, fan_out), jnp.float32, -bound, bound)
        return w, b

    w1, b1 = lin(ks[0], ks[1], input_dim, H1)
    w2, b2 = lin(ks[2], ks[3], H1, H2)
    w3, b3 = lin(ks[4], ks[5], H2, embedding_dim)

    def ones(n):
        return jnp.ones((1, n), jnp.float32)

    def zeros(n):
        return jnp.zeros((1, n), jnp.float32)

    return {
        "g0": ones(input_dim), "b0": zeros(input_dim),
        "w1": w1, "b1": b1, "g1": ones(H1), "bt1": zeros(H1),
        "w2": w2, "b2": b2, "g2": ones(H2), "bt2": zeros(H2),
        "w3": w3, "b3": b3, "g3": ones(embedding_dim), "bt3": zeros(embedding_dim),
    }


def _layernorm_ref(x, gamma, beta):
    mu = jnp.mean(x, axis=-1, keepdims=True)
    var = jnp.mean((x - mu) ** 2, axis=-1, keepdims=True)
    return (x - mu) * jax.lax.rsqrt(var + LN_EPS) * gamma + beta


def reference_forward(x, params):
    """Pure-JAX f32 reference (eval-mode PyTorch semantics, two-pass LN)."""
    B, S, D = x.shape
    h = x.reshape(B * S, D)
    h = _layernorm_ref(h, params["g0"], params["b0"])
    h = jnp.maximum(_layernorm_ref(h @ params["w1"] + params["b1"],
                                   params["g1"], params["bt1"]), 0.0)
    h = jnp.maximum(_layernorm_ref(h @ params["w2"] + params["b2"],
                                   params["g2"], params["bt2"]), 0.0)
    h = jnp.maximum(_layernorm_ref(h @ params["w3"] + params["b3"],
                                   params["g3"], params["bt3"]), 0.0)
    return h.reshape(B, S, -1)


if __name__ == "__main__":
    key = jax.random.PRNGKey(0)
    kx, kp, kx2 = jax.random.split(key, 3)

    # Small demo shapes consistent with the module (B, S, D) -> (B, S, E).
    B, S, D, E = 2, 8, 32, 64
    params = init_params(kp, input_dim=D, embedding_dim=E)

    x = jax.random.normal(kx, (B, S, D), jnp.float32)
    out = jax.block_until_ready(c22_encoder(x, params))
    ref = reference_forward(x, params)
    assert out.shape == (B, S, E), out.shape
    # bf16 matmul operands with f32 accumulation -> loosened tolerance vs f32 ref.
    assert jnp.allclose(out, ref, atol=5e-2, rtol=5e-2), (
        float(jnp.max(jnp.abs(out - ref))))

    # Second check: row count not a multiple of the tile (exercises the
    # ragged last grid block and the lane-padded output slice).
    B2, S2 = 3, 100
    x2 = jax.random.normal(kx2, (B2, S2, D), jnp.float32)
    out2 = jax.block_until_ready(c22_encoder(x2, params))
    ref2 = reference_forward(x2, params)
    assert out2.shape == (B2, S2, E), out2.shape
    assert jnp.allclose(out2, ref2, atol=5e-2, rtol=5e-2), (
        float(jnp.max(jnp.abs(out2 - ref2))))

    print("KERNEL_OK")
</pallas_src>

<mosaic_0001>
module attributes {stable_mosaic.version = 11 : i64} {
  func.func @c22_encoder_kernel(%arg0: i32, %arg1: memref<8x32xf32, #tpu.memory_space<vmem>>, %arg2: memref<2x32xf32, #tpu.memory_space<vmem>>, %arg3: memref<32x256xbf16, #tpu.memory_space<vmem>>, %arg4: memref<3x256xf32, #tpu.memory_space<vmem>>, %arg5: memref<256x128xbf16, #tpu.memory_space<vmem>>, %arg6: memref<3x128xf32, #tpu.memory_space<vmem>>, %arg7: memref<128x128xbf16, #tpu.memory_space<vmem>>, %arg8: memref<3x128xf32, #tpu.memory_space<vmem>>, %arg9: memref<8x128xf32, #tpu.memory_space<vmem>>) attributes {dimension_semantics = [#tpu.dimension_semantics<parallel>], iteration_bounds = array<i64: 2>, scalar_prefetch = 0 : i64, scratch_operands = 0 : i64, tpu.core_type = #tpu.core_type<tc>, window_params = [{transform_indices = @transform_0, window_bounds = array<i64: 8, 32>}, {pipeline_mode = #tpu.pipeline_mode<synchronous>, transform_indices = @transform_1, window_bounds = array<i64: 2, 32>}, {pipeline_mode = #tpu.pipeline_mode<synchronous>, transform_indices = @transform_2, window_bounds = array<i64: 32, 256>}, {pipeline_mode = #tpu.pipeline_mode<synchronous>, transform_indices = @transform_3, window_bounds = array<i64: 3, 256>}, {pipeline_mode = #tpu.pipeline_mode<synchronous>, transform_indices = @transform_4, window_bounds = array<i64: 256, 128>}, {pipeline_mode = #tpu.pipeline_mode<synchronous>, transform_indices = @transform_5, window_bounds = array<i64: 3, 128>}, {pipeline_mode = #tpu.pipeline_mode<synchronous>, transform_indices = @transform_6, window_bounds = array<i64: 128, 128>}, {pipeline_mode = #tpu.pipeline_mode<synchronous>, transform_indices = @transform_7, window_bounds = array<i64: 3, 128>}, {transform_indices = @transform_8, window_bounds = array<i64: 8, 128>}]} {
    %c0 = arith.constant 0 : index
    %c0_0 = arith.constant 0 : index
    %0 = vector.load %arg1[%c0, %c0_0] : memref<8x32xf32, #tpu.memory_space<vmem>>, vector<8x32xf32>
    %c0_1 = arith.constant 0 : index
    %c0_2 = arith.constant 0 : index
    %1 = vector.load %arg2[%c0_1, %c0_2] : memref<2x32xf32, #tpu.memory_space<vmem>>, vector<2x32xf32>
    %2 = vector.extract_strided_slice %1 {offsets = [0, 0], sizes = [1, 32], strides = [1, 1]} : vector<2x32xf32> to vector<1x32xf32>
    %3 = vector.extract_strided_slice %1 {offsets = [1, 0], sizes = [1, 32], strides = [1, 1]} : vector<2x32xf32> to vector<1x32xf32>
    %cst = arith.constant dense<0.000000e+00> : vector<8xf32>
    %4 = vector.multi_reduction <add>, %0, %cst [1] : vector<8x32xf32> to vector<8xf32>
    %5 = vector.shape_cast %4 : vector<8xf32> to vector<8x1xf32>
    %6 = arith.mulf %0, %0 : vector<8x32xf32>
    %cst_3 = arith.constant dense<0.000000e+00> : vector<8xf32>
    %7 = vector.multi_reduction <add>, %6, %cst_3 [1] : vector<8x32xf32> to vector<8xf32>
    %8 = vector.shape_cast %7 : vector<8xf32> to vector<8x1xf32>
    %cst_4 = arith.constant 3.125000e-02 : f32
    %9 = vector.broadcast %cst_4 : f32 to vector<8x1xf32>
    %10 = arith.mulf %5, %9 : vector<8x1xf32>
    %cst_5 = arith.constant 3.125000e-02 : f32
    %11 = vector.broadcast %cst_5 : f32 to vector<8x1xf32>
    %12 = arith.mulf %8, %11 : vector<8x1xf32>
    %13 = arith.mulf %10, %10 : vector<8x1xf32>
    %14 = arith.subf %12, %13 : vector<8x1xf32>
    %cst_6 = arith.constant 0.000000e+00 : f32
    %15 = vector.broadcast %cst_6 : f32 to vector<8x1xf32>
    %16 = arith.maximumf %14, %15 : vector<8x1xf32>
    %cst_7 = arith.constant 9.99999974E-6 : f32
    %17 = vector.broadcast %cst_7 : f32 to vector<8x1xf32>
    %18 = arith.addf %16, %17 : vector<8x1xf32>
    %19 = math.rsqrt %18 : vector<8x1xf32>
    %20 = vector.broadcast %2 : vector<1x32xf32> to vector<8x32xf32>
    %21 = vector.broadcast %19 : vector<8x1xf32> to vector<8x32xf32>
    %22 = arith.mulf %20, %21 : vector<8x32xf32>
    %23 = vector.broadcast %10 : vector<8x1xf32> to vector<8x32xf32>
    %24 = arith.subf %0, %23 : vector<8x32xf32>
    %25 = arith.mulf %24, %22 : vector<8x32xf32>
    %26 = vector.broadcast %3 : vector<1x32xf32> to vector<8x32xf32>
    %27 = arith.addf %25, %26 : vector<8x32xf32>
    %c0_8 = arith.constant 0 : index
    %c0_9 = arith.constant 0 : index
    %28 = vector.load %arg4[%c0_8, %c0_9] : memref<3x256xf32, #tpu.memory_space<vmem>>, vector<3x256xf32>
    %29 = arith.truncf %27 : vector<8x32xf32> to vector<8x32xbf16>
    %c0_10 = arith.constant 0 : index
    %c0_11 = arith.constant 0 : index
    %30 = vector.load %arg3[%c0_10, %c0_11] : memref<32x256xbf16, #tpu.memory_space<vmem>>, vector<32x256xbf16>
    %cst_12 = arith.constant dense<0.000000e+00> : vector<8x256xf32>
    %31 = tpu.matmul %29, %30, %cst_12 {dimension_numbers = #tpu.dot_dimension_numbers<[1], [0], [0], [1], [0, 0, 1, 1], [], []>} : vector<8x32xbf16>, vector<32x256xbf16>, vector<8x256xf32> -> vector<8x256xf32>
    %32 = vector.extract_strided_slice %28 {offsets = [0, 0], sizes = [1, 256], strides = [1, 1]} : vector<3x256xf32> to vector<1x256xf32>
    %33 = vector.broadcast %32 : vector<1x256xf32> to vector<8x256xf32>
    %34 = arith.addf %31, %33 : vector<8x256xf32>
    %35 = vector.extract_strided_slice %28 {offsets = [1, 0], sizes = [1, 256], strides = [1, 1]} : vector<3x256xf32> to vector<1x256xf32>
    %36 = vector.extract_strided_slice %28 {offsets = [2, 0], sizes = [1, 256], strides = [1, 1]} : vector<3x256xf32> to vector<1x256xf32>
    %cst_13 = arith.constant dense<0.000000e+00> : vector<8xf32>
    %37 = vector.multi_reduction <add>, %34, %cst_13 [1] : vector<8x256xf32> to vector<8xf32>
    %38 = vector.shape_cast %37 : vector<8xf32> to vector<8x1xf32>
    %39 = arith.mulf %34, %34 : vector<8x256xf32>
    %cst_14 = arith.constant dense<0.000000e+00> : vector<8xf32>
    %40 = vector.multi_reduction <add>, %39, %cst_14 [1] : vector<8x256xf32> to vector<8xf32>
    %41 = vector.shape_cast %40 : vector<8xf32> to vector<8x1xf32>
    %cst_15 = arith.constant 3.906250e-03 : f32
    %42 = vector.broadcast %cst_15 : f32 to vector<8x1xf32>
    %43 = arith.mulf %38, %42 : vector<8x1xf32>
    %cst_16 = arith.constant 3.906250e-03 : f32
    %44 = vector.broadcast %cst_16 : f32 to vector<8x1xf32>
    %45 = arith.mulf %41, %44 : vector<8x1xf32>
    %46 = arith.mulf %43, %43 : vector<8x1xf32>
    %47 = arith.subf %45, %46 : vector<8x1xf32>
    %cst_17 = arith.constant 0.000000e+00 : f32
    %48 = vector.broadcast %cst_17 : f32 to vector<8x1xf32>
    %49 = arith.maximumf %47, %48 : vector<8x1xf32>
    %cst_18 = arith.constant 9.99999974E-6 : f32
    %50 = vector.broadcast %cst_18 : f32 to vector<8x1xf32>
    %51 = arith.addf %49, %50 : vector<8x1xf32>
    %52 = math.rsqrt %51 : vector<8x1xf32>
    %53 = vector.broadcast %35 : vector<1x256xf32> to vector<8x256xf32>
    %54 = vector.broadcast %52 : vector<8x1xf32> to vector<8x256xf32>
    %55 = arith.mulf %53, %54 : vector<8x256xf32>
    %56 = vector.broadcast %43 : vector<8x1xf32> to vector<8x256xf32>
    %57 = arith.subf %34, %56 : vector<8x256xf32>
    %58 = arith.mulf %57, %55 : vector<8x256xf32>
    %59 = vector.broadcast %36 : vector<1x256xf32> to vector<8x256xf32>
    %60 = arith.addf %58, %59 : vector<8x256xf32>
    %cst_19 = arith.constant 0.000000e+00 : f32
    %61 = vector.broadcast %cst_19 : f32 to vector<8x256xf32>
    %62 = arith.maximumf %60, %61 : vector<8x256xf32>
    %c0_20 = arith.constant 0 : index
    %c0_21 = arith.constant 0 : index
    %63 = vector.load %arg6[%c0_20, %c0_21] : memref<3x128xf32, #tpu.memory_space<vmem>>, vector<3x128xf32>
    %64 = arith.truncf %62 : vector<8x256xf32> to vector<8x256xbf16>
    %c0_22 = arith.constant 0 : index
    %c0_23 = arith.constant 0 : index
    %65 = vector.load %arg5[%c0_22, %c0_23] : memref<256x128xbf16, #tpu.memory_space<vmem>>, vector<256x128xbf16>
    %cst_24 = arith.constant dense<0.000000e+00> : vector<8x128xf32>
    %66 = tpu.matmul %64, %65, %cst_24 {dimension_numbers = #tpu.dot_dimension_numbers<[1], [0], [0], [1], [0, 0, 1, 1], [], []>} : vector<8x256xbf16>, vector<256x128xbf16>, vector<8x128xf32> -> vector<8x128xf32>
    %67 = vector.extract_strided_slice %63 {offsets = [0, 0], sizes = [1, 128], strides = [1, 1]} : vector<3x128xf32> to vector<1x128xf32>
    %68 = vector.broadcast %67 : vector<1x128xf32> to vector<8x128xf32>
    %69 = arith.addf %66, %68 : vector<8x128xf32>
    %70 = vector.extract_strided_slice %63 {offsets = [1, 0], sizes = [1, 128], strides = [1, 1]} : vector<3x128xf32> to vector<1x128xf32>
    %71 = vector.extract_strided_slice %63 {offsets = [2, 0], sizes = [1, 128], strides = [1, 1]} : vector<3x128xf32> to vector<1x128xf32>
    %cst_25 = arith.constant dense<0.000000e+00> : vector<8xf32>
    %72 = vector.multi_reduction <add>, %69, %cst_25 [1] : vector<8x128xf32> to vector<8xf32>
    %73 = vector.shape_cast %72 : vector<8xf32> to vector<8x1xf32>
    %74 = arith.mulf %69, %69 : vector<8x128xf32>
    %cst_26 = arith.constant dense<0.000000e+00> : vector<8xf32>
    %75 = vector.multi_reduction <add>, %74, %cst_26 [1] : vector<8x128xf32> to vector<8xf32>
    %76 = vector.shape_cast %75 : vector<8xf32> to vector<8x1xf32>
    %cst_27 = arith.constant 7.812500e-03 : f32
    %77 = vector.broadcast %cst_27 : f32 to vector<8x1xf32>
    %78 = arith.mulf %73, %77 : vector<8x1xf32>
    %cst_28 = arith.constant 7.812500e-03 : f32
    %79 = vector.broadcast %cst_28 : f32 to vector<8x1xf32>
    %80 = arith.mulf %76, %79 : vector<8x1xf32>
    %81 = arith.mulf %78, %78 : vector<8x1xf32>
    %82 = arith.subf %80, %81 : vector<8x1xf32>
    %cst_29 = arith.constant 0.000000e+00 : f32
    %83 = vector.broadcast %cst_29 : f32 to vector<8x1xf32>
    %84 = arith.maximumf %82, %83 : vector<8x1xf32>
    %cst_30 = arith.constant 9.99999974E-6 : f32
    %85 = vector.broadcast %cst_30 : f32 to vector<8x1xf32>
    %86 = arith.addf %84, %85 : vector<8x1xf32>
    %87 = math.rsqrt %86 : vector<8x1xf32>
    %88 = vector.broadcast %70 : vector<1x128xf32> to vector<8x128xf32>
    %89 = vector.broadcast %87 : vector<8x1xf32> to vector<8x128xf32>
    %90 = arith.mulf %88, %89 : vector<8x128xf32>
    %91 = vector.broadcast %78 : vector<8x1xf32> to vector<8x128xf32>
    %92 = arith.subf %69, %91 : vector<8x128xf32>
    %93 = arith.mulf %92, %90 : vector<8x128xf32>
    %94 = vector.broadcast %71 : vector<1x128xf32> to vector<8x128xf32>
    %95 = arith.addf %93, %94 : vector<8x128xf32>
    %cst_31 = arith.constant 0.000000e+00 : f32
    %96 = vector.broadcast %cst_31 : f32 to vector<8x128xf32>
    %97 = arith.maximumf %95, %96 : vector<8x128xf32>
    %c0_32 = arith.constant 0 : index
    %c0_33 = arith.constant 0 : index
    %98 = vector.load %arg8[%c0_32, %c0_33] : memref<3x128xf32, #tpu.memory_space<vmem>>, vector<3x128xf32>
    %99 = arith.truncf %97 : vector<8x128xf32> to vector<8x128xbf16>
    %c0_34 = arith.constant 0 : index
    %c0_35 = arith.constant 0 : index
    %100 = vector.load %arg7[%c0_34, %c0_35] : memref<128x128xbf16, #tpu.memory_space<vmem>>, vector<128x128xbf16>
    %cst_36 = arith.constant dense<0.000000e+00> : vector<8x128xf32>
    %101 = tpu.matmul %99, %100, %cst_36 {dimension_numbers = #tpu.dot_dimension_numbers<[1], [0], [0], [1], [0, 0, 1, 1], [], []>} : vector<8x128xbf16>, vector<128x128xbf16>, vector<8x128xf32> -> vector<8x128xf32>
    %102 = vector.extract_strided_slice %98 {offsets = [0, 0], sizes = [1, 128], strides = [1, 1]} : vector<3x128xf32> to vector<1x128xf32>
    %103 = vector.broadcast %102 : vector<1x128xf32> to vector<8x128xf32>
    %104 = arith.addf %101, %103 : vector<8x128xf32>
    %105 = vector.extract_strided_slice %98 {offsets = [1, 0], sizes = [1, 128], strides = [1, 1]} : vector<3x128xf32> to vector<1x128xf32>
    %106 = vector.extract_strided_slice %98 {offsets = [2, 0], sizes = [1, 128], strides = [1, 1]} : vector<3x128xf32> to vector<1x128xf32>
    %cst_37 = arith.constant dense<0.000000e+00> : vector<8xf32>
    %107 = vector.multi_reduction <add>, %104, %cst_37 [1] : vector<8x128xf32> to vector<8xf32>
    %108 = vector.shape_cast %107 : vector<8xf32> to vector<8x1xf32>
    %109 = arith.mulf %104, %104 : vector<8x128xf32>
    %cst_38 = arith.constant dense<0.000000e+00> : vector<8xf32>
    %110 = vector.multi_reduction <add>, %109, %cst_38 [1] : vector<8x128xf32> to vector<8xf32>
    %111 = vector.shape_cast %110 : vector<8xf32> to vector<8x1xf32>
    %cst_39 = arith.constant 1.562500e-02 : f32
    %112 = vector.broadcast %cst_39 : f32 to vector<8x1xf32>
    %113 = arith.mulf %108, %112 : vector<8x1xf32>
    %cst_40 = arith.constant 1.562500e-02 : f32
    %114 = vector.broadcast %cst_40 : f32 to vector<8x1xf32>
    %115 = arith.mulf %111, %114 : vector<8x1xf32>
    %116 = arith.mulf %113, %113 : vector<8x1xf32>
    %117 = arith.subf %115, %116 : vector<8x1xf32>
    %cst_41 = arith.constant 0.000000e+00 : f32
    %118 = vector.broadcast %cst_41 : f32 to vector<8x1xf32>
    %119 = arith.maximumf %117, %118 : vector<8x1xf32>
    %cst_42 = arith.constant 9.99999974E-6 : f32
    %120 = vector.broadcast %cst_42 : f32 to vector<8x1xf32>
    %121 = arith.addf %119, %120 : vector<8x1xf32>
    %122 = math.rsqrt %121 : vector<8x1xf32>
    %123 = vector.broadcast %105 : vector<1x128xf32> to vector<8x128xf32>
    %124 = vector.broadcast %122 : vector<8x1xf32> to vector<8x128xf32>
    %125 = arith.mulf %123, %124 : vector<8x128xf32>
    %126 = vector.broadcast %113 : vector<8x1xf32> to vector<8x128xf32>
    %127 = arith.subf %104, %126 : vector<8x128xf32>
    %128 = arith.mulf %127, %125 : vector<8x128xf32>
    %129 = vector.broadcast %106 : vector<1x128xf32> to vector<8x128xf32>
    %130 = arith.addf %128, %129 : vector<8x128xf32>
    %cst_43 = arith.constant 0.000000e+00 : f32
    %131 = vector.broadcast %cst_43 : f32 to vector<8x128xf32>
    %132 = arith.maximumf %130, %131 : vector<8x128xf32>
    %c0_44 = arith.constant 0 : index
    %c0_45 = arith.constant 0 : index
    %133 = vector.load %arg9[%c0_44, %c0_45] : memref<8x128xf32, #tpu.memory_space<vmem>>, vector<8x128xf32>
    tpu.vector_store %arg9[%c0_44, %c0_45], %132 {strides = array<i32>} : memref<8x128xf32, #tpu.memory_space<vmem>>, vector<8x128xf32>,
    return
  }
  func.func @transform_0(%arg0: i32) -> (i32, i32) {
    %c0_i32 = arith.constant 0 : i32
    %c0_i32_0 = arith.constant 0 : i32
    return %arg0, %c0_i32 : i32, i32
  }
  func.func @transform_1(%arg0: i32) -> (i32, i32) {
    %c0_i32 = arith.constant 0 : i32
    %c0_i32_0 = arith.constant 0 : i32
    %c0_i32_1 = arith.constant 0 : i32
    return %c0_i32, %c0_i32_0 : i32, i32
  }
  func.func @transform_2(%arg0: i32) -> (i32, i32) {
    %c0_i32 = arith.constant 0 : i32
    %c0_i32_0 = arith.constant 0 : i32
    %c0_i32_1 = arith.constant 0 : i32
    return %c0_i32, %c0_i32_0 : i32, i32
  }
  func.func @transform_3(%arg0: i32) -> (i32, i32) {
    %c0_i32 = arith.constant 0 : i32
    %c0_i32_0 = arith.constant 0 : i32
    %c0_i32_1 = arith.constant 0 : i32
    return %c0_i32, %c0_i32_0 : i32, i32
  }
  func.func @transform_4(%arg0: i32) -> (i32, i32) {
    %c0_i32 = arith.constant 0 : i32
    %c0_i32_0 = arith.constant 0 : i32
    %c0_i32_1 = arith.constant 0 : i32
    return %c0_i32, %c0_i32_0 : i32, i32
  }
  func.func @transform_5(%arg0: i32) -> (i32, i32) {
    %c0_i32 = arith.constant 0 : i32
    %c0_i32_0 = arith.constant 0 : i32
    %c0_i32_1 = arith.constant 0 : i32
    return %c0_i32, %c0_i32_0 : i32, i32
  }
  func.func @transform_6(%arg0: i32) -> (i32, i32) {
    %c0_i32 = arith.constant 0 : i32
    %c0_i32_0 = arith.constant 0 : i32
    %c0_i32_1 = arith.constant 0 : i32
    return %c0_i32, %c0_i32_0 : i32, i32
  }
  func.func @transform_7(%arg0: i32) -> (i32, i32) {
    %c0_i32 = arith.constant 0 : i32
    %c0_i32_0 = arith.constant 0 : i32
    %c0_i32_1 = arith.constant 0 : i32
    return %c0_i32, %c0_i32_0 : i32, i32
  }
  func.func @transform_8(%arg0: i32) -> (i32, i32) {
    %c0_i32 = arith.constant 0 : i32
    %c0_i32_0 = arith.constant 0 : i32
    return %arg0, %c0_i32 : i32, i32
  }
}

</mosaic_0001>

<llo_original>
// kernel: c22_encoder.1
$region0: #{c22_encoder.1}
  #allocation0 [shape = 'u32[]', space=smem, size = 0x4, offset = 0x4, fixed_abs, tag = 'smem constant byte address 0x4 - core index']
  #allocation1 [shape = 'u32[144,128]{1,0:T(1,128)}', space=vmem, size = 0x12000, scoped, tag = 'internal scratch']
  %s0 = inlined_call_operand.vmem [shape: f32[16,32], index: 0, kind: input, shape index: {}]
  %s1 = inlined_call_operand.vmem [shape: f32[2,32], index: 1, kind: input, shape index: {}]
  %s2 = inlined_call_operand.vmem [shape: bf16[32,256], index: 2, kind: input, shape index: {}]
  %s3 = inlined_call_operand.vmem [shape: f32[3,256], index: 3, kind: input, shape index: {}]
  %s4 = inlined_call_operand.vmem [shape: bf16[256,128], index: 4, kind: input, shape index: {}]
  %s5 = inlined_call_operand.vmem [shape: f32[3,128], index: 5, kind: input, shape index: {}]
  %s6 = inlined_call_operand.vmem [shape: bf16[128,128], index: 6, kind: input, shape index: {}]
  %s7 = inlined_call_operand.vmem [shape: f32[3,128], index: 7, kind: input, shape index: {}]
  %s8 = inlined_call_operand.vmem [shape: f32[16,128], index: 8, kind: output, shape index: {}]
  %s9 = sld [smem:[#allocation0]]
  $region65: #{c22_encoder.1} parent=0
    _
  %s11 = ssub.s32 1, %s9
  %s12 = scalar_select 0, %s11, %s9
  loop: start=0, step=1, limit=4
  $region2: #{c22_encoder.1} parent=0 // loop_pre_header
    _
  $region3: #{c22_encoder.1} parent=0 // loop_header
    %s14 = sphi 0, %s18
    %p15 = scmp.ge.s32.totalorder %s14, 4
    %s24 = sphi 0, %s26
    %s27 = sphi 0, %s24
    %s28 = sphi 0, %s27
    %s44 = sphi 0, %s28
    %s48 = sphi 0, %s48
    %s50 = sphi 0, %s48
    %s51 = sphi 0, %s50
    %s65 = sphi 0, %s51
    %s69 = sphi 0, %s69
    %s71 = sphi 0, %s69
    %s72 = sphi 0, %s71
    %s86 = sphi 0, %s72
    %s90 = sphi 0, %s90
    %s92 = sphi 0, %s90
    %s93 = sphi 0, %s92
    %s107 = sphi 0, %s93
    %s111 = sphi 0, %s111
    %s113 = sphi 0, %s111
    %s114 = sphi 0, %s113
    %s128 = sphi 0, %s114
    %s132 = sphi 0, %s132
    %s134 = sphi 0, %s132
    %s135 = sphi 0, %s134
    %s149 = sphi 0, %s135
    %s153 = sphi 0, %s153
    %s155 = sphi 0, %s153
    %s156 = sphi 0, %s155
    %s170 = sphi 0, %s156
    %s174 = sphi 0, %s174
    %s176 = sphi 0, %s174
    %s177 = sphi 0, %s176
    %s191 = sphi 0, %s177
    %s197 = sphi 0, %s199
    %s200 = sphi 0, %s197
    %s201 = sphi 0, %s200
    %s217 = sphi 0, %s201
  $region4: #{c22_encoder.1} parent=0 // loop_header_branch
    %17 = sbr.rel (%p15) target = $region8
  $region5: #{c22_encoder.1} parent=0 // loop_body
    %s19 = ssub.s32 %s14, 1
    %s20 = ssub.s32 %s14, 2
    %s21 = sadd.s32 %s14, 1
    %s22 = ssub.s32 %s14, %s21
    %p23 = scmp.eq.s32.totalorder %s22, 0
    %s25 = sadd.s32 %s24, 1
    %s26 = scalar_select %p23, %s24, %s25
    %p29 = pneg %p23
    %p30 = scmp.eq.s32.totalorder %s14, 1
    %p31 = por %p29, %p30
    %p32 = scmp.ne.s32.totalorder %s24, %s27
    %p33 = scmp.eq.s32.totalorder %s14, 0
    %p34 = por %p32, %p33
    %p35 = scmp.ne.s32.totalorder %s24, %s27
    %p36 = scmp.eq.s32.totalorder %s19, 1
    %p37 = por %p35, %p36
    %p38 = scmp.ne.s32.totalorder %s27, %s28
    %p39 = scmp.eq.s32.totalorder %s19, 0
    %p40 = por %p38, %p39
    %p41 = scmp.ne.s32.totalorder %s27, %s28
    %p42 = scmp.eq.s32.totalorder %s20, 1
    %p43 = por %p41, %p42
    %p45 = scmp.ne.s32.totalorder %s28, %s44
    %p46 = scmp.eq.s32.totalorder %s20, 0
    %p47 = por %p45, %p46
    %s49 = sadd.s32 %s48, 1
    %p52 = scmp.eq.s32.totalorder %s14, 1
    %p53 = scmp.ne.s32.totalorder %s48, %s50
    %p54 = scmp.eq.s32.totalorder %s14, 0
    %p55 = por %p53, %p54
    %p56 = scmp.ne.s32.totalorder %s48, %s50
    %p57 = scmp.eq.s32.totalorder %s19, 1
    %p58 = por %p56, %p57
    %p59 = scmp.ne.s32.totalorder %s50, %s51
    %p60 = scmp.eq.s32.totalorder %s19, 0
    %p61 = por %p59, %p60
    %p62 = scmp.ne.s32.totalorder %s50, %s51
    %p63 = scmp.eq.s32.totalorder %s20, 1
    %p64 = por %p62, %p63
    %p66 = scmp.ne.s32.totalorder %s51, %s65
    %p67 = scmp.eq.s32.totalorder %s20, 0
    %p68 = por %p66, %p67
    %s70 = sadd.s32 %s69, 1
    %p73 = scmp.eq.s32.totalorder %s14, 1
    %p74 = scmp.ne.s32.totalorder %s69, %s71
    %p75 = scmp.eq.s32.totalorder %s14, 0
    %p76 = por %p74, %p75
    %p77 = scmp.ne.s32.totalorder %s69, %s71
    %p78 = scmp.eq.s32.totalorder %s19, 1
    %p79 = por %p77, %p78
    %p80 = scmp.ne.s32.totalorder %s71, %s72
    %p81 = scmp.eq.s32.totalorder %s19, 0
    %p82 = por %p80, %p81
    %p83 = scmp.ne.s32.totalorder %s71, %s72
    %p84 = scmp.eq.s32.totalorder %s20, 1
    %p85 = por %p83, %p84
    %p87 = scmp.ne.s32.totalorder %s72, %s86
    %p88 = scmp.eq.s32.totalorder %s20, 0
    %p89 = por %p87, %p88
    %s91 = sadd.s32 %s90, 1
    %p94 = scmp.eq.s32.totalorder %s14, 1
    %p95 = scmp.ne.s32.totalorder %s90, %s92
    %p96 = scmp.eq.s32.totalorder %s14, 0
    %p97 = por %p95, %p96
    %p98 = scmp.ne.s32.totalorder %s90, %s92
    %p99 = scmp.eq.s32.totalorder %s19, 1
    %p100 = por %p98, %p99
    %p101 = scmp.ne.s32.totalorder %s92, %s93
    %p102 = scmp.eq.s32.totalorder %s19, 0
    %p103 = por %p101, %p102
    %p104 = scmp.ne.s32.totalorder %s92, %s93
    %p105 = scmp.eq.s32.totalorder %s20, 1
    %p106 = por %p104, %p105
    %p108 = scmp.ne.s32.totalorder %s93, %s107
    %p109 = scmp.eq.s32.totalorder %s20, 0
    %p110 = por %p108, %p109
    %s112 = sadd.s32 %s111, 1
    %p115 = scmp.eq.s32.totalorder %s14, 1
    %p116 = scmp.ne.s32.totalorder %s111, %s113
    %p117 = scmp.eq.s32.totalorder %s14, 0
    %p118 = por %p116, %p117
    %p119 = scmp.ne.s32.totalorder %s111, %s113
    %p120 = scmp.eq.s32.totalorder %s19, 1
    %p121 = por %p119, %p120
    %p122 = scmp.ne.s32.totalorder %s113, %s114
    %p123 = scmp.eq.s32.totalorder %s19, 0
    %p124 = por %p122, %p123
    %p125 = scmp.ne.s32.totalorder %s113, %s114
    %p126 = scmp.eq.s32.totalorder %s20, 1
    %p127 = por %p125, %p126
    %p129 = scmp.ne.s32.totalorder %s114, %s128
    %p130 = scmp.eq.s32.totalorder %s20, 0
    %p131 = por %p129, %p130
    %s133 = sadd.s32 %s132, 1
    %p136 = scmp.eq.s32.totalorder %s14, 1
    %p137 = scmp.ne.s32.totalorder %s132, %s134
    %p138 = scmp.eq.s32.totalorder %s14, 0
    %p139 = por %p137, %p138
    %p140 = scmp.ne.s32.totalorder %s132, %s134
    %p141 = scmp.eq.s32.totalorder %s19, 1
    %p142 = por %p140, %p141
    %p143 = scmp.ne.s32.totalorder %s134, %s135
    %p144 = scmp.eq.s32.totalorder %s19, 0
    %p145 = por %p143, %p144
    %p146 = scmp.ne.s32.totalorder %s134, %s135
    %p147 = scmp.eq.s32.totalorder %s20, 1
    %p148 = por %p146, %p147
    %p150 = scmp.ne.s32.totalorder %s135, %s149
    %p151 = scmp.eq.s32.totalorder %s20, 0
    %p152 = por %p150, %p151
    %s154 = sadd.s32 %s153, 1
    %p157 = scmp.eq.s32.totalorder %s14, 1
    %p158 = scmp.ne.s32.totalorder %s153, %s155
    %p159 = scmp.eq.s32.totalorder %s14, 0
    %p160 = por %p158, %p159
    %p161 = scmp.ne.s32.totalorder %s153, %s155
    %p162 = scmp.eq.s32.totalorder %s19, 1
    %p163 = por %p161, %p162
    %p164 = scmp.ne.s32.totalorder %s155, %s156
    %p165 = scmp.eq.s32.totalorder %s19, 0
    %p166 = por %p164, %p165
    %p167 = scmp.ne.s32.totalorder %s155, %s156
    %p168 = scmp.eq.s32.totalorder %s20, 1
    %p169 = por %p167, %p168
    %p171 = scmp.ne.s32.totalorder %s156, %s170
    %p172 = scmp.eq.s32.totalorder %s20, 0
    %p173 = por %p171, %p172
    %s175 = sadd.s32 %s174, 1
    %p178 = scmp.eq.s32.totalorder %s14, 1
    %p179 = scmp.ne.s32.totalorder %s174, %s176
    %p180 = scmp.eq.s32.totalorder %s14, 0
    %p181 = por %p179, %p180
    %p182 = scmp.ne.s32.totalorder %s174, %s176
    %p183 = scmp.eq.s32.totalorder %s19, 1
    %p184 = por %p182, %p183
    %p185 = scmp.ne.s32.totalorder %s176, %s177
    %p186 = scmp.eq.s32.totalorder %s19, 0
    %p187 = por %p185, %p186
    %p188 = scmp.ne.s32.totalorder %s176, %s177
    %p189 = scmp.eq.s32.totalorder %s20, 1
    %p190 = por %p188, %p189
    %p192 = scmp.ne.s32.totalorder %s177, %s191
    %p193 = scmp.eq.s32.totalorder %s20, 0
    %p194 = por %p192, %p193
    %s195 = ssub.s32 %s14, %s21
    %p196 = scmp.eq.s32.totalorder %s195, 0
    %s198 = sadd.s32 %s197, 1
    %s199 = scalar_select %p196, %s197, %s198
    %p202 = pneg %p196
    %p203 = scmp.eq.s32.totalorder %s14, 1
    %p204 = por %p202, %p203
    %p205 = scmp.ne.s32.totalorder %s197, %s200
    %p206 = scmp.eq.s32.totalorder %s14, 0
    %p207 = por %p205, %p206
    %p208 = scmp.ne.s32.totalorder %s197, %s200
    %p209 = scmp.eq.s32.totalorder %s19, 1
    %p210 = por %p208, %p209
    %p211 = scmp.ne.s32.totalorder %s200, %s201
    %p212 = scmp.eq.s32.totalorder %s19, 0
    %p213 = por %p211, %p212
    %p214 = scmp.ne.s32.totalorder %s200, %s201
    %p215 = scmp.eq.s32.totalorder %s20, 1
    %p216 = por %p214, %p215
    %p218 = scmp.ne.s32.totalorder %s201, %s217
    %p219 = scmp.eq.s32.totalorder %s20, 0
    %p220 = por %p218, %p219
    %p221 = scmp.le.s32.totalorder 1, %s14
    %p222 = scmp.lt.s32.totalorder %s14, 3
    %p223 = pnand %p221, %p222
    %p224 = pneg %p223
    // Predicated region
    $region9: #{c22_encoder.1} parent=5 // pred_check
      _
    $region10: #{c22_encoder.1} parent=5 // pred_check_branch
      %226 = sbr.rel (%p223) target = $region12
    $region11: #{c22_encoder.1} parent=5 // pred_region
      %s227 = ssub.s32 %s14, 1
      // Predicated region
      $region13: #{c22_encoder.1} parent=11 // pred_check
        %p228 = pneg %p61
      $region14: #{c22_encoder.1} parent=11 // pred_check_branch
        %230 = sbr.rel (%p228) target = $region16
      $region15: #{c22_encoder.1} parent=11 // pred_region
        _
      $region16: #{c22_encoder.1} parent=11 // pred_fallthru
        _
      // Predicated region
      $region17: #{c22_encoder.1} parent=11 // pred_check
        %p231 = pneg %p82
      $region18: #{c22_encoder.1} parent=11 // pred_check_branch
        %233 = sbr.rel (%p231) target = $region20
      $region19: #{c22_encoder.1} parent=11 // pred_region
        _
      $region20: #{c22_encoder.1} parent=11 // pred_fallthru
        _
      // Predicated region
      $region21: #{c22_encoder.1} parent=11 // pred_check
        %p234 = pneg %p103
      $region22: #{c22_encoder.1} parent=11 // pred_check_branch
        %236 = sbr.rel (%p234) target = $region24
      $region23: #{c22_encoder.1} parent=11 // pred_region
        _
      $region24: #{c22_encoder.1} parent=11 // pred_fallthru
        _
      // Predicated region
      $region25: #{c22_encoder.1} parent=11 // pred_check
        %p237 = pneg %p124
      $region26: #{c22_encoder.1} parent=11 // pred_check_branch
        %239 = sbr.rel (%p237) target = $region28
      $region27: #{c22_encoder.1} parent=11 // pred_region
        _
      $region28: #{c22_encoder.1} parent=11 // pred_fallthru
        _
      // Predicated region
      $region29: #{c22_encoder.1} parent=11 // pred_check
        %p240 = pneg %p145
      $region30: #{c22_encoder.1} parent=11 // pred_check_branch
        %242 = sbr.rel (%p240) target = $region32
      $region31: #{c22_encoder.1} parent=11 // pred_region
        _
      $region32: #{c22_encoder.1} parent=11 // pred_fallthru
        _
      // Predicated region
      $region33: #{c22_encoder.1} parent=11 // pred_check
        %p243 = pneg %p166
      $region34: #{c22_encoder.1} parent=11 // pred_check_branch
        %245 = sbr.rel (%p243) target = $region36
      $region35: #{c22_encoder.1} parent=11 // pred_region
        _
      $region36: #{c22_encoder.1} parent=11 // pred_fallthru
        _
      // Predicated region
      $region37: #{c22_encoder.1} parent=11 // pred_check
        %p246 = pneg %p187
      $region38: #{c22_encoder.1} parent=11 // pred_check_branch
        %248 = sbr.rel (%p246) target = $region40
      $region39: #{c22_encoder.1} parent=11 // pred_region
        _
      $region40: #{c22_encoder.1} parent=11 // pred_fallthru
        _
    $region12: #{c22_encoder.1} parent=5 // pred_fallthru
      _
    %p249 = scmp.lt.s32.totalorder %s14, 2
    // Predicated region
    $region41: #{c22_encoder.1} parent=5 // pred_check
      %p250 = pneg %p249
    $region42: #{c22_encoder.1} parent=5 // pred_check_branch
      %252 = sbr.rel (%p250) target = $region44
    $region43: #{c22_encoder.1} parent=5 // pred_region
      // Predicated region
      $region45: #{c22_encoder.1} parent=43 // pred_check
        %p253 = pneg %p34
      $region46: #{c22_encoder.1} parent=43 // pred_check_branch
        %255 = sbr.rel (%p253) target = $region48
      $region47: #{c22_encoder.1} parent=43 // pred_region
        %p256 = scmp.lt.s32.totalorder %s14, 1
        %s257 = scalar_select %p256, %s14, 1
        %s258 = smul.addr %s257, 8
        %s259 = scalar_lea.vmem %s0, %s258
      $region48: #{c22_encoder.1} parent=43 // pred_fallthru
        _
    $region44: #{c22_encoder.1} parent=5 // pred_fallthru
      _
    %p260 = scmp.le.s32.totalorder 1, %s14
    %p261 = scmp.lt.s32.totalorder %s14, 3
    %p262 = pnand %p260, %p261
    %p263 = pneg %p262
    // Predicated region
    $region49: #{c22_encoder.1} parent=5 // pred_check
      _
    $region50: #{c22_encoder.1} parent=5 // pred_check_branch
      %265 = sbr.rel (%p262) target = $region52
    $region51: #{c22_encoder.1} parent=5 // pred_region
      %s266 = ssub.s32 %s14, 1
      %p267 = scmp.lt.s32.totalorder %s19, 1
      %s268 = scalar_select %p267, %s19, 1
      %s269 = smul.addr %s268, 8
      %s270 = scalar_lea.vmem %s0, %s269
      %p271 = pneg %p40
      %p272 = pneg %p37
      %p273 = pneg %p61
      %p274 = pneg %p58
      %p275 = pneg %p82
      %p276 = pneg %p79
      %p277 = pneg %p103
      %p278 = pneg %p100
      %p279 = pneg %p124
      %p280 = pneg %p121
      %p281 = pneg %p145
      %p282 = pneg %p142
      %p283 = pneg %p166
      %p284 = pneg %p163
      %p285 = pneg %p187
      %p286 = pneg %p184
      %p287 = pneg %p213
      %p288 = pneg %p210
      %p289 = scmp.lt.s32.totalorder %s19, 1
      %s290 = scalar_select %p289, %s19, 1
      %s291 = smul.addr %s290, 8
      %s292 = scalar_lea.vmem %s8, %s291
      %p293 = scmp.lt.s32.totalorder %s19, 1
      %s294 = scalar_select %p293, %s19, 1
      %s295 = smul.addr %s294, 8
      %s296 = scalar_lea.vmem %s0, %s295
      %p297 = scmp.lt.s32.totalorder %s19, 1
      %s298 = scalar_select %p297, %s19, 1
      %s299 = smul.addr %s298, 8
      %s300 = scalar_lea.vmem %s8, %s299
      %v302 = vld [vmem:[%s296] sm:$0xff]
      %v303 = vld [vmem:[%s1] sm:$0x3]
      %vm304 = vcmask 261120
      %v305 = vsel %vm304, %v302, 0.0
      %306 = vadd.xlane.f32.xlu0 %v305
      %v307 = vpop.xlane.xlu0 %306
      %v308 = vmul.f32 %v302, %v302
      %v309 = vsel %vm304, %v308, 0.0
      %310 = vadd.xlane.f32.xlu0 %v309
      %v311 = vpop.xlane.xlu0 %310
      %v312 = vmul.f32 %v307, 0.03125
      %v313 = vmul.f32 %v311, 0.03125
      %v314 = vmul.f32 %v312, %v312
      %v315 = vsub.f32 %v313, %v314
      %v316 = vmax.f32 %v315, 0.0
      %v317 = vadd.f32 %v316, 1e-05
      %v318 = vrsqrt.pop %v317
      %v319 = vlaneseq
      %v320 = vshrl.u32 %v319, 7
      %v321 = vsub.s32 0, %v320
      %v322 = vrot.slane %v303, %v321
      %v323 = vmul.f32 %v322, %v318
      %v324 = vsub.f32 %v302, %v312
      %v325 = vmul.f32 %v324, %v323
      %v326 = vlaneseq
      %v327 = vshrl.u32 %v326, 7
      %v328 = vsub.s32 1, %v327
      %v329 = vrot.slane %v303, %v328
      %v330 = vadd.f32 %v325, %v329
      %v331 = vld [vmem:[%s3] sm:$0x77]
      %v332 = vpack.c.bf16 %v330, %v330
      %v333 = vld [vmem:[%s2] sm:$0xff]
      %v334 = vld [vmem:[%s2 + $0x8] sm:$0xff]
      %v335 = vld [vmem:[%s2 + $0x10] sm:$0xff]
      %v336 = vld [vmem:[%s2 + $0x18] sm:$0xff]
      %v338 = vlaneseq
      %v339 = vshrl.u32 %v338, 7
      %v340 = vsub.s32 0, %v339
      %v341 = vrot.slane %v331, %v340
      %v342 = vlaneseq
      %v343 = vshrl.u32 %v342, 7
      %v344 = vsub.s32 4, %v343
      %v345 = vrot.slane %v331, %v344
      %v348 = vlaneseq
      %v349 = vshrl.u32 %v348, 7
      %v350 = vsub.s32 0, %v349
      %v351 = vrot.slane %v341, %v350
      %v352 = vlaneseq
      %v353 = vshrl.u32 %v352, 7
      %v354 = vsub.s32 0, %v353
      %v355 = vrot.slane %v345, %v354
      %v360 = vunpack.c.l.b16 %v333
      %v361 = vunpack.c.h.b16 %v333
      %v362 = vunpack.c.l.b16 %v334
      %v363 = vunpack.c.h.b16 %v334
      %v364 = vunpack.c.l.b16 %v335
      %v365 = vunpack.c.h.b16 %v335
      %v366 = vunpack.c.l.b16 %v336
      %v367 = vunpack.c.h.b16 %v336
      %v368 = vpack.c.b16 %v362, %v360
      %v369 = vpack.c.b16 %v363, %v361
      %v370 = vpack.c.b16 %v366, %v364
      %v371 = vpack.c.b16 %v367, %v365
      %v377 = vsel %vm304, %v332, 0
      %379 = vmatprep.subr.bf16.mxu0 %v369
      %380 = vmatpush1.bf16.msra.mxu0 %v368
      %381 = vmatprep.subr.bf16.mxu0 %v371
      %382 = vmatpush1.bf16.msra.mxu0 %v370
      %383 = vmatprep.subr.bf16.mxu0 0
      %384 = vmatpush1.bf16.msra.mxu0 0
      %385 = vmatprep.subr.bf16.mxu0 0
      %386 = vmatpush1.bf16.msra.mxu0 0
      %387 = vmatprep.subr.bf16.mxu0 0
      %388 = vmatpush1.bf16.msra.mxu0 0
      %389 = vmatprep.subr.bf16.mxu0 0
      %390 = vmatpush1.bf16.msra.mxu0 0
      %391 = vmatprep.subr.bf16.mxu0 0
      %392 = vmatpush1.bf16.msra.mxu0 0
      %393 = vmatprep.subr.bf16.mxu0 0
      %394 = vmatpush1.bf16.msra.mxu0 0
      %395 = vmatprep.subr.bf16.mxu0 0
      %396 = vmatpush1.bf16.msra.mxu0 0
      %397 = vmatprep.subr.bf16.mxu0 0
      %398 = vmatpush1.bf16.msra.mxu0 0
      %399 = vmatprep.subr.bf16.mxu0 0
      %400 = vmatpush1.bf16.msra.mxu0 0
      %401 = vmatprep.subr.bf16.mxu0 0
      %402 = vmatpush1.bf16.msra.mxu0 0
      %403 = vmatprep.subr.bf16.mxu0 0
      %404 = vmatpush1.bf16.msra.mxu0 0
      %405 = vmatprep.subr.bf16.mxu0 0
      %406 = vmatpush1.bf16.msra.mxu0 0
      %407 = vmatprep.subr.bf16.mxu0 0
      %408 = vmatpush1.bf16.msra.mxu0 0
      %409 = vmatprep.subr.bf16.mxu0 0
      %410 = vmatpush1.bf16.msra.mxu0 0
      %411 = vmatprep.mubr.bf16.mxu0 0
      %412 = vmatmul.mubr.bf16.gmra.mrb[0].mxu0 %v377
      %v413 = vpop.f32.mrb[0].mxu0
      %v414 = vadd.f32 %v351, %v413
      %v415 = vpop.f32.mrb[0].mxu0
      %v416 = vadd.f32 %v355, %v415
      %v417 = vpop.f32.mrb[0].mxu0
      %v418 = vpop.f32.mrb[0].mxu0
      %419 = vdwg.mxu0
      %v420 = vadd.f32 %v414, %v416
      %421 = vadd.xlane.f32.xlu0 %v420
      %v422 = vpop.xlane.xlu0 %421
      %v423 = vmul.f32 %v414, %v414
      %v424 = vmul.f32 %v416, %v416
      %v425 = vadd.f32 %v423, %v424
      %426 = vadd.xlane.f32.xlu0 %v425
      %v427 = vpop.xlane.xlu0 %426
      %v428 = vmul.f32 %v422, 0.00390625
      %v429 = vmul.f32 %v427, 0.00390625
      %v430 = vmul.f32 %v428, %v428
      %v431 = vsub.f32 %v429, %v430
      %v432 = vmax.f32 %v431, 0.0
      %v433 = vadd.f32 %v432, 1e-05
      %v434 = vrsqrt.pop %v433
      %v435 = vlaneseq
      %v436 = vshrl.u32 %v435, 7
      %v437 = vsub.s32 1, %v436
      %v438 = vrot.slane %v331, %v437
      %v439 = vlaneseq
      %v440 = vshrl.u32 %v439, 7
      %v441 = vsub.s32 5, %v440
      %v442 = vrot.slane %v331, %v441
      %v445 = vlaneseq
      %v446 = vshrl.u32 %v445, 7
      %v447 = vsub.s32 1, %v446
      %v448 = vrot.slane %v438, %v447
      %v449 = vlaneseq
      %v450 = vshrl.u32 %v449, 7
      %v451 = vsub.s32 1, %v450
      %v452 = vrot.slane %v442, %v451
      %v453 = vmul.f32 %v448, %v434
      %v454 = vmul.f32 %v452, %v434
      %v455 = vsub.f32 %v414, %v428
      %v456 = vsub.f32 %v416, %v428
      %v457 = vmul.f32 %v455, %v453
      %v458 = vmul.f32 %v456, %v454
      %v459 = vlaneseq
      %v460 = vshrl.u32 %v459, 7
      %v461 = vsub.s32 2, %v460
      %v462 = vrot.slane %v331, %v461
      %v463 = vlaneseq
      %v464 = vshrl.u32 %v463, 7
      %v465 = vsub.s32 6, %v464
      %v466 = vrot.slane %v331, %v465
      %v469 = vlaneseq
      %v470 = vshrl.u32 %v469, 7
      %v471 = vsub.s32 2, %v470
      %v472 = vrot.slane %v462, %v471
      %v473 = vlaneseq
      %v474 = vshrl.u32 %v473, 7
      %v475 = vsub.s32 2, %v474
      %v476 = vrot.slane %v466, %v475
      %v477 = vadd.f32 %v457, %v472
      %v478 = vadd.f32 %v458, %v476
      %v479 = vmax.f32 %v477, 0.0
      %v480 = vmax.f32 %v478, 0.0
      %v481 = vld [vmem:[%s5] sm:$0x7]
      %v482 = vpack.c.bf16 %v479, %v479
      %v483 = vpack.c.bf16 %v480, %v480
      %v484 = vld [vmem:[%s4] sm:$0xf]
      %v485 = vld [vmem:[%s4 + $0x4] sm:$0xf]
      %v486 = vld [vmem:[%s4 + $0x8] sm:$0xf]
      %v487 = vld [vmem:[%s4 + $0xc] sm:$0xf]
      %v488 = vld [vmem:[%s4 + $0x10] sm:$0xf]
      %v489 = vld [vmem:[%s4 + $0x14] sm:$0xf]
      %v490 = vld [vmem:[%s4 + $0x18] sm:$0xf]
      %v491 = vld [vmem:[%s4 + $0x1c] sm:$0xf]
      %v492 = vld [vmem:[%s4 + $0x20] sm:$0xf]
      %v493 = vld [vmem:[%s4 + $0x24] sm:$0xf]
      %v494 = vld [vmem:[%s4 + $0x28] sm:$0xf]
      %v495 = vld [vmem:[%s4 + $0x2c] sm:$0xf]
      %v496 = vld [vmem:[%s4 + $0x30] sm:$0xf]
      %v497 = vld [vmem:[%s4 + $0x34] sm:$0xf]
      %v498 = vld [vmem:[%s4 + $0x38] sm:$0xf]
      %v499 = vld [vmem:[%s4 + $0x3c] sm:$0xf]
      %v500 = vld [vmem:[%s4 + $0x40] sm:$0xf]
      %v501 = vld [vmem:[%s4 + $0x44] sm:$0xf]
      %v502 = vld [vmem:[%s4 + $0x48] sm:$0xf]
      %v503 = vld [vmem:[%s4 + $0x4c] sm:$0xf]
      %v504 = vld [vmem:[%s4 + $0x50] sm:$0xf]
      %v505 = vld [vmem:[%s4 + $0x54] sm:$0xf]
      %v506 = vld [vmem:[%s4 + $0x58] sm:$0xf]
      %v507 = vld [vmem:[%s4 + $0x5c] sm:$0xf]
      %v508 = vld [vmem:[%s4 + $0x60] sm:$0xf]
      %v509 = vld [vmem:[%s4 + $0x64] sm:$0xf]
      %v510 = vld [vmem:[%s4 + $0x68] sm:$0xf]
      %v511 = vld [vmem:[%s4 + $0x6c] sm:$0xf]
      %v512 = vld [vmem:[%s4 + $0x70] sm:$0xf]
      %v513 = vld [vmem:[%s4 + $0x74] sm:$0xf]
      %v514 = vld [vmem:[%s4 + $0x78] sm:$0xf]
      %v515 = vld [vmem:[%s4 + $0x7c] sm:$0xf]
      %v516 = vlaneseq
      %v517 = vshrl.u32 %v516, 7
      %v518 = vsub.s32 0, %v517
      %v519 = vrot.slane %v481, %v518
      %v552 = vunpack.c.l.b16 %v484
      %v553 = vunpack.c.l.b16 %v485
      %v554 = vunpack.c.l.b16 %v486
      %v555 = vunpack.c.l.b16 %v487
      %v556 = vunpack.c.l.b16 %v488
      %v557 = vunpack.c.l.b16 %v489
      %v558 = vunpack.c.l.b16 %v490
      %v559 = vunpack.c.l.b16 %v491
      %v560 = vunpack.c.l.b16 %v492
      %v561 = vunpack.c.l.b16 %v493
      %v562 = vunpack.c.l.b16 %v494
      %v563 = vunpack.c.l.b16 %v495
      %v564 = vunpack.c.l.b16 %v496
      %v565 = vunpack.c.l.b16 %v497
      %v566 = vunpack.c.l.b16 %v498
      %v567 = vunpack.c.l.b16 %v499
      %v568 = vunpack.c.l.b16 %v500
      %v569 = vunpack.c.l.b16 %v501
      %v570 = vunpack.c.l.b16 %v502
      %v571 = vunpack.c.l.b16 %v503
      %v572 = vunpack.c.l.b16 %v504
      %v573 = vunpack.c.l.b16 %v505
      %v574 = vunpack.c.l.b16 %v506
      %v575 = vunpack.c.l.b16 %v507
      %v576 = vunpack.c.l.b16 %v508
      %v577 = vunpack.c.l.b16 %v509
      %v578 = vunpack.c.l.b16 %v510
      %v579 = vunpack.c.l.b16 %v511
      %v580 = vunpack.c.l.b16 %v512
      %v581 = vunpack.c.l.b16 %v513
      %v582 = vunpack.c.l.b16 %v514
      %v583 = vunpack.c.l.b16 %v515
      %v584 = vpack.c.b16 %v553, %v552
      %v585 = vpack.c.b16 %v555, %v554
      %v586 = vpack.c.b16 %v557, %v556
      %v587 = vpack.c.b16 %v559, %v558
      %v588 = vpack.c.b16 %v561, %v560
      %v589 = vpack.c.b16 %v563, %v562
      %v590 = vpack.c.b16 %v565, %v564
      %v591 = vpack.c.b16 %v567, %v566
      %v592 = vpack.c.b16 %v569, %v568
      %v593 = vpack.c.b16 %v571, %v570
      %v594 = vpack.c.b16 %v573, %v572
      %v595 = vpack.c.b16 %v575, %v574
      %v596 = vpack.c.b16 %v577, %v576
      %v597 = vpack.c.b16 %v579, %v578
      %v598 = vpack.c.b16 %v581, %v580
      %v599 = vpack.c.b16 %v583, %v582
      %616 = vmatprep.subr.bf16.mxu0 0
      %617 = vmatpush1.bf16.msra.mxu0 %v584
      %618 = vmatprep.subr.bf16.mxu0 0
      %619 = vmatpush1.bf16.msra.mxu0 %v585
      %620 = vmatprep.subr.bf16.mxu0 0
      %621 = vmatpush1.bf16.msra.mxu0 %v586
      %622 = vmatprep.subr.bf16.mxu0 0
      %623 = vmatpush1.bf16.msra.mxu0 %v587
      %624 = vmatprep.subr.bf16.mxu0 0
      %625 = vmatpush1.bf16.msra.mxu0 %v588
      %626 = vmatprep.subr.bf16.mxu0 0
      %627 = vmatpush1.bf16.msra.mxu0 %v589
      %628 = vmatprep.subr.bf16.mxu0 0
      %629 = vmatpush1.bf16.msra.mxu0 %v590
      %630 = vmatprep.subr.bf16.mxu0 0
      %631 = vmatpush1.bf16.msra.mxu0 %v591
      %632 = vmatprep.subr.bf16.mxu0 0
      %633 = vmatpush1.bf16.msra.mxu0 %v592
      %634 = vmatprep.subr.bf16.mxu0 0
      %635 = vmatpush1.bf16.msra.mxu0 %v593
      %636 = vmatprep.subr.bf16.mxu0 0
      %637 = vmatpush1.bf16.msra.mxu0 %v594
      %638 = vmatprep.subr.bf16.mxu0 0
      %639 = vmatpush1.bf16.msra.mxu0 %v595
      %640 = vmatprep.subr.bf16.mxu0 0
      %641 = vmatpush1.bf16.msra.mxu0 %v596
      %642 = vmatprep.subr.bf16.mxu0 0
      %643 = vmatpush1.bf16.msra.mxu0 %v597
      %644 = vmatprep.subr.bf16.mxu0 0
      %645 = vmatpush1.bf16.msra.mxu0 %v598
      %646 = vmatprep.subr.bf16.mxu0 0
      %647 = vmatpush1.bf16.msra.mxu0 %v599
      %648 = vmatprep.mubr.bf16.mxu0 %v483
      %649 = vmatmul.mubr.bf16.gmra.mrb[0].mxu0 %v482
      %v650 = vpop.f32.mrb[0].mxu0
      %v651 = vadd.f32 %v519, %v650
      %v652 = vpop.f32.mrb[0].mxu0
      %v653 = vpop.f32.mrb[0].mxu0
      %v654 = vpop.f32.mrb[0].mxu0
      %655 = vdwg.mxu0
      %656 = vadd.xlane.f32.xlu0 %v651
      %v657 = vpop.xlane.xlu0 %656
      %v658 = vmul.f32 %v651, %v651
      %659 = vadd.xlane.f32.xlu0 %v658
      %v660 = vpop.xlane.xlu0 %659
      %v661 = vmul.f32 %v657, 0.0078125
      %v662 = vmul.f32 %v660, 0.0078125
      %v663 = vmul.f32 %v661, %v661
      %v664 = vsub.f32 %v662, %v663
      %v665 = vmax.f32 %v664, 0.0
      %v666 = vadd.f32 %v665, 1e-05
      %v667 = vrsqrt.pop %v666
      %v668 = vlaneseq
      %v669 = vshrl.u32 %v668, 7
      %v670 = vsub.s32 1, %v669
      %v671 = vrot.slane %v481, %v670
      %v672 = vmul.f32 %v671, %v667
      %v673 = vsub.f32 %v651, %v661
      %v674 = vmul.f32 %v673, %v672
      %v675 = vlaneseq
      %v676 = vshrl.u32 %v675, 7
      %v677 = vsub.s32 2, %v676
      %v678 = vrot.slane %v481, %v677
      %v679 = vadd.f32 %v674, %v678
      %v680 = vmax.f32 %v679, 0.0
      %v681 = vld [vmem:[%s7] sm:$0x7]
      %v682 = vpack.c.bf16 %v680, %v680
      %v683 = vld [vmem:[%s6] sm:$0xf]
      %v684 = vld [vmem:[%s6 + $0x4] sm:$0xf]
      %v685 = vld [vmem:[%s6 + $0x8] sm:$0xf]
      %v686 = vld [vmem:[%s6 + $0xc] sm:$0xf]
      %v687 = vld [vmem:[%s6 + $0x10] sm:$0xf]
      %v688 = vld [vmem:[%s6 + $0x14] sm:$0xf]
      %v689 = vld [vmem:[%s6 + $0x18] sm:$0xf]
      %v690 = vld [vmem:[%s6 + $0x1c] sm:$0xf]
      %v691 = vld [vmem:[%s6 + $0x20] sm:$0xf]
      %v692 = vld [vmem:[%s6 + $0x24] sm:$0xf]
      %v693 = vld [vmem:[%s6 + $0x28] sm:$0xf]
      %v694 = vld [vmem:[%s6 + $0x2c] sm:$0xf]
      %v695 = vld [vmem:[%s6 + $0x30] sm:$0xf]
      %v696 = vld [vmem:[%s6 + $0x34] sm:$0xf]
      %v697 = vld [vmem:[%s6 + $0x38] sm:$0xf]
      %v698 = vld [vmem:[%s6 + $0x3c] sm:$0xf]
      %v699 = vlaneseq
      %v700 = vshrl.u32 %v699, 7
      %v701 = vsub.s32 0, %v700
      %v702 = vrot.slane %v681, %v701
      %v719 = vunpack.c.l.b16 %v683
      %v720 = vunpack.c.l.b16 %v684
      %v721 = vunpack.c.l.b16 %v685
      %v722 = vunpack.c.l.b16 %v686
      %v723 = vunpack.c.l.b16 %v687
      %v724 = vunpack.c.l.b16 %v688
      %v725 = vunpack.c.l.b16 %v689
      %v726 = vunpack.c.l.b16 %v690
      %v727 = vunpack.c.l.b16 %v691
      %v728 = vunpack.c.l.b16 %v692
      %v729 = vunpack.c.l.b16 %v693
      %v730 = vunpack.c.l.b16 %v694
      %v731 = vunpack.c.l.b16 %v695
      %v732 = vunpack.c.l.b16 %v696
      %v733 = vunpack.c.l.b16 %v697
      %v734 = vunpack.c.l.b16 %v698
      %v735 = vpack.c.b16 %v720, %v719
      %v736 = vpack.c.b16 %v722, %v721
      %v737 = vpack.c.b16 %v724, %v723
      %v738 = vpack.c.b16 %v726, %v725
      %v739 = vpack.c.b16 %v728, %v727
      %v740 = vpack.c.b16 %v730, %v729
      %v741 = vpack.c.b16 %v732, %v731
      %v742 = vpack.c.b16 %v734, %v733
      %751 = vmatprep.subr.bf16.mxu0 0
      %752 = vmatpush1.bf16.msra.mxu0 %v735
      %753 = vmatprep.subr.bf16.mxu0 0
      %754 = vmatpush1.bf16.msra.mxu0 %v736
      %755 = vmatprep.subr.bf16.mxu0 0
      %756 = vmatpush1.bf16.msra.mxu0 %v737
      %757 = vmatprep.subr.bf16.mxu0 0
      %758 = vmatpush1.bf16.msra.mxu0 %v738
      %759 = vmatprep.subr.bf16.mxu0 0
      %760 = vmatpush1.bf16.msra.mxu0 %v739
      %761 = vmatprep.subr.bf16.mxu0 0
      %762 = vmatpush1.bf16.msra.mxu0 %v740
      %763 = vmatprep.subr.bf16.mxu0 0
      %764 = vmatpush1.bf16.msra.mxu0 %v741
      %765 = vmatprep.subr.bf16.mxu0 0
      %766 = vmatpush1.bf16.msra.mxu0 %v742
      %767 = vmatprep.subr.bf16.mxu0 0
      %768 = vmatpush1.bf16.msra.mxu0 0
      %769 = vmatprep.subr.bf16.mxu0 0
      %770 = vmatpush1.bf16.msra.mxu0 0
      %771 = vmatprep.subr.bf16.mxu0 0
      %772 = vmatpush1.bf16.msra.mxu0 0
      %773 = vmatprep.subr.bf16.mxu0 0
      %774 = vmatpush1.bf16.msra.mxu0 0
      %775 = vmatprep.subr.bf16.mxu0 0
      %776 = vmatpush1.bf16.msra.mxu0 0
      %777 = vmatprep.subr.bf16.mxu0 0
      %778 = vmatpush1.bf16.msra.mxu0 0
      %779 = vmatprep.subr.bf16.mxu0 0
      %780 = vmatpush1.bf16.msra.mxu0 0
      %781 = vmatprep.subr.bf16.mxu0 0
      %782 = vmatpush1.bf16.msra.mxu0 0
      %783 = vmatprep.mubr.bf16.mxu0 0
      %784 = vmatmul.mubr.bf16.gmra.mrb[0].mxu0 %v682
      %v785 = vpop.f32.mrb[0].mxu0
      %v786 = vadd.f32 %v702, %v785
      %v787 = vpop.f32.mrb[0].mxu0
      %v788 = vpop.f32.mrb[0].mxu0
      %v789 = vpop.f32.mrb[0].mxu0
      %790 = vdwg.mxu0
      %791 = vadd.xlane.f32.xlu0 %v786
      %v792 = vpop.xlane.xlu0 %791
      %v793 = vmul.f32 %v786, %v786
      %794 = vadd.xlane.f32.xlu0 %v793
      %v795 = vpop.xlane.xlu0 %794
      %v796 = vmul.f32 %v792, 0.015625
      %v797 = vmul.f32 %v795, 0.015625
      %v798 = vmul.f32 %v796, %v796
      %v799 = vsub.f32 %v797, %v798
      %v800 = vmax.f32 %v799, 0.0
      %v801 = vadd.f32 %v800, 1e-05
      %v802 = vrsqrt.pop %v801
      %v803 = vlaneseq
      %v804 = vshrl.u32 %v803, 7
      %v805 = vsub.s32 1, %v804
      %v806 = vrot.slane %v681, %v805
      %v807 = vmul.f32 %v806, %v802
      %v808 = vsub.f32 %v786, %v796
      %v809 = vmul.f32 %v808, %v807
      %v810 = vlaneseq
      %v811 = vshrl.u32 %v810, 7
      %v812 = vsub.s32 2, %v811
      %v813 = vrot.slane %v681, %v812
      %v814 = vadd.f32 %v809, %v813
      %v815 = vmax.f32 %v814, 0.0
      %816 = vst [vmem:[%s300] sm:$0xff] %v815
      %p817 = scmp.lt.s32.totalorder %s19, 1
      %s818 = scalar_select %p817, %s19, 1
      %s819 = smul.addr %s818, 8
      %s820 = scalar_lea.vmem %s8, %s819
      // Predicated region
      $region53: #{c22_encoder.1} parent=51 // pred_check
        %p821 = pneg %p210
      $region54: #{c22_encoder.1} parent=51 // pred_check_branch
        %823 = sbr.rel (%p821) target = $region56
      $region55: #{c22_encoder.1} parent=51 // pred_region
        _
      $region56: #{c22_encoder.1} parent=51 // pred_fallthru
        _
    $region52: #{c22_encoder.1} parent=5 // pred_fallthru
      _
    %p824 = scmp.le.s32.totalorder 2, %s14
    // Predicated region
    $region57: #{c22_encoder.1} parent=5 // pred_check
      %p825 = pneg %p824
    $region58: #{c22_encoder.1} parent=5 // pred_check_branch
      %827 = sbr.rel (%p825) target = $region60
    $region59: #{c22_encoder.1} parent=5 // pred_region
      %s828 = ssub.s32 %s14, 2
      // Predicated region
      $region61: #{c22_encoder.1} parent=59 // pred_check
        %p829 = pneg %p216
      $region62: #{c22_encoder.1} parent=59 // pred_check_branch
        %831 = sbr.rel (%p829) target = $region64
      $region63: #{c22_encoder.1} parent=59 // pred_region
        %p832 = scmp.lt.s32.totalorder %s20, 1
        %s833 = scalar_select %p832, %s20, 1
        %s834 = smul.addr %s833, 8
        %s835 = scalar_lea.vmem %s8, %s834
      $region64: #{c22_encoder.1} parent=59 // pred_fallthru
        _
    $region60: #{c22_encoder.1} parent=5 // pred_fallthru
      _
  $region6: #{c22_encoder.1} parent=0 // loop_footer
    %s18 = sadd.s32 1, %s14
  $region7: #{c22_encoder.1} parent=0 // loop_footer_branch
    %13 = sbr.rel target = $region3
  $region8: #{c22_encoder.1} parent=0 // loop_exit
    _

</llo_original>
